<compile_context>
chip_gen: v7x
topology: tpu7x:2x2x1
jax: 0.10.0
libtpu: 0.0.40
codegen_flags: <defaults>
</compile_context>

<pallas_src>
import functools

import jax
import jax.numpy as jnp
from jax.experimental import pallas as pl
from jax.experimental.pallas import tpu as pltpu


def _round_up(x, m):
    return (x + m - 1) // m * m


def _vmem_capacity_bytes(default=64 << 20):
    """Query physical VMEM capacity; fall back to the smallest (v7x) if unknown."""
    try:
        info = pltpu.get_tpu_info()
        cap = getattr(info, "vmem_capacity_bytes", None)
        if cap:
            return int(cap)
    except Exception:
        pass
    return default


def fused_relation_kernel(x_ref, w1_ref, w2_ref, out_ref):
    """One BS row-tile: fc1 -> ReLU -> block-diagonal fc2 for ALL relations."""
    # f32 activations read from HBM; cast to bf16 on the VPU (no extra HBM pass).
    x = x_ref[...].astype(jnp.bfloat16)
    # fc1 for every relation at once: (TM, D) @ (D, RHp) -> f32 acc
    h = jnp.dot(x, w1_ref[...], preferred_element_type=jnp.float32)
    h = jnp.maximum(h, 0.0).astype(jnp.bfloat16)
    # block-diagonal fc2: (TM, RHp) @ (RHp, NOp) -> lane-dense f32 logits
    # TODO(synk): if 2*R ever exceeds 128 (NOp > 128), split fc2 over output
    # column groups so each group only multiplies its own relations' H rows.
    out_ref[...] = jnp.dot(h, w2_ref[...], preferred_element_type=jnp.float32)


def pack_relation_weights(w1_stack, w2_stack):
    """Pack per-relation Linear weights (torch layout) into fused, padded, bf16
    matrices.  Done ONCE (outside the jitted forward).

    w1_stack: (R, H, D) -> W1_all (D, RHp)            with RHp = round_up(R*H, 256)
    w2_stack: (R, 2, H) -> W2_blk (RHp, NOp) blockdiag with NOp = round_up(R*2, 128)
    """
    R, H, D = w1_stack.shape
    RH = R * H
    NO = 2 * R
    RHp = _round_up(RH, 256)   # multiple of 256: fully tiles the 2x256 MXU (v6e/v7x)
    NOp = _round_up(NO, 128)

    # fc1: columns ordered (relation-major, hidden-minor)
    w1_all = jnp.transpose(w1_stack, (2, 0, 1)).reshape(D, RH)
    w1_all = jnp.pad(w1_all, ((0, 0), (0, RHp - RH))).astype(jnp.bfloat16)

    # fc2 as block diagonal: rows r*H:(r+1)*H map to cols 2r:2r+2
    w2_t = jnp.transpose(w2_stack, (0, 2, 1))                  # (R, H, 2)
    eye = jnp.eye(R, dtype=w2_t.dtype)
    w2_blk = jnp.einsum('rhc,rs->rhsc', w2_t, eye).reshape(RH, NO)
    w2_blk = jnp.pad(w2_blk, ((0, RHp - RH), (0, NOp - NO))).astype(jnp.bfloat16)

    return w1_all, w2_blk


def _select_tm(BS, D, RHp, NOp, vmem_budget):
    """Largest 16-aligned row tile fitting the VMEM budget, >=2 tiles if possible."""
    def vmem_need(tm):
        weights = D * RHp * 2 + RHp * NOp * 2          # single resident bf16 copies
        x_tile = 2 * tm * D * 4                        # double-buffered f32 rows
        o_tile = 2 * tm * NOp * 4                      # double-buffered f32 logits
        h_tmp = tm * RHp * (4 + 2)                     # f32 h + bf16 copy
        return weights + x_tile + o_tile + h_tmp

    tm_cap = 16
    for cand in (1024, 512, 256, 128, 64, 32, 16):
        if vmem_need(cand) <= vmem_budget:
            tm_cap = cand
            break

    # Prefer >= 2 row tiles so megacore / dual-TC (v7x) sharding has work for
    # both cores; also avoids worst-case padding (e.g. BS=513 -> two 272-row tiles).
    num_tiles = max(pl.cdiv(BS, tm_cap), 2 if BS > 16 else 1)
    tm = min(tm_cap, _round_up(pl.cdiv(BS, num_tiles), 16))
    return tm, vmem_need(tm)


@functools.partial(jax.jit, static_argnames=("num_relations",))
def relation_classifier_forward(x, w1_all, w2_blk, *, num_relations):
    """x: (B, S, D) f32; w1_all: (D, RHp) bf16; w2_blk: (RHp, NOp) bf16."""
    B, S, D = x.shape
    R = num_relations
    NO = 2 * R
    RHp = w1_all.shape[1]
    NOp = w2_blk.shape[1]
    BS = B * S

    vmem_cap = _vmem_capacity_bytes()
    TM, vmem_need = _select_tm(BS, D, RHp, NOp, int(0.65 * vmem_cap))
    num_tiles = pl.cdiv(BS, TM)
    BS_pad = num_tiles * TM
    vmem_limit = int(min(0.9 * vmem_cap, max(1.3 * vmem_need, 32 << 20)))

    # No HBM pad / cast copy of x: reshape is metadata-only, the last (partial)
    # block reads unspecified rows that only feed padded output rows.
    x2d = x.reshape(BS, D)

    flops = 2 * BS_pad * (D * RHp + RHp * NOp)
    bytes_accessed = (BS * D * 4            # activation read (f32)
                      + D * RHp * 2         # fused fc1 weights (bf16, once)
                      + RHp * NOp * 2       # block-diag fc2 weights (bf16, once)
                      + BS_pad * NOp * 4)   # logits write (f32)

    logits_pad = pl.pallas_call(
        fused_relation_kernel,
        out_shape=jax.ShapeDtypeStruct((BS_pad, NOp), jnp.float32),
        grid_spec=pltpu.PrefetchScalarGridSpec(
            num_scalar_prefetch=0,
            grid=(num_tiles,),
            in_specs=[
                pl.BlockSpec((TM, D), lambda i: (i, 0)),             # f32 row tile
                pl.BlockSpec(memory_space=pltpu.MemorySpace.VMEM),   # fc1 weights,
                pl.BlockSpec(memory_space=pltpu.MemorySpace.VMEM),   # fc2 weights:
            ],                                                       # resident once
            out_specs=pl.BlockSpec((TM, NOp), lambda i: (i, 0)),
        ),
        compiler_params=pltpu.CompilerParams(
            dimension_semantics=("parallel",),
            vmem_limit_bytes=vmem_limit),
        cost_estimate=pl.CostEstimate(
            flops=flops, transcendentals=0, bytes_accessed=bytes_accessed),
    )(x2d, w1_all, w2_blk)

    # (BS, R*2) -> (B, S, R, 2); columns are relation-major, class-minor.
    logits4 = logits_pad[:BS, :NO].reshape(B, S, R, 2)

    # loss_list: one (B, S, 2) tensor per relation (single transpose + cheap slices).
    logits_rbs2 = jnp.transpose(logits4, (2, 0, 1, 3))          # (R, B, S, 2)
    loss_list = [logits_rbs2[r] for r in range(R)]

    # torch.max(res, 2) per relation, then mask / pad / final argmax.
    prob = jnp.max(logits4, axis=3)                             # (B, S, R)
    idx = jnp.argmax(logits4, axis=3)                           # first max on ties
    masked = jnp.where(idx != 1, jnp.float32(-999.0), prob)
    pad = jnp.full((B, S, 1), -998.0, dtype=jnp.float32)
    pred_type = jnp.argmax(jnp.concatenate([masked, pad], axis=2), axis=2)

    return pred_type, loss_list


def _reference_forward(x, w1_stack, w2_stack):
    """Pure-JAX reference mirroring the PyTorch forward at the kernel's precision
    (bf16 operands, f32 accumulation)."""
    B, S, D = x.shape
    R = w1_stack.shape[0]
    xb = x.astype(jnp.bfloat16).astype(jnp.float32)
    probs, idxs, loss_list = [], [], []
    for r in range(R):
        w1 = w1_stack[r].astype(jnp.bfloat16).astype(jnp.float32)
        w2 = w2_stack[r].astype(jnp.bfloat16).astype(jnp.float32)
        h = jnp.maximum(xb @ w1.T, 0.0)
        h = h.astype(jnp.bfloat16).astype(jnp.float32)
        logits = h @ w2.T                                       # (B, S, 2)
        loss_list.append(logits)
        probs.append(jnp.max(logits, axis=2))
        idxs.append(jnp.argmax(logits, axis=2))
    prob = jnp.transpose(jnp.stack(probs), (1, 2, 0))
    idx = jnp.transpose(jnp.stack(idxs), (1, 2, 0))
    masked = jnp.where(idx != 1, -999.0, prob)
    cat = jnp.concatenate([masked, jnp.full((B, S, 1), -998.0)], axis=2)
    return jnp.argmax(cat, axis=2), loss_list


if __name__ == "__main__":
    # Small shapes consistent with the module:
    #   Entity_Prep_Way == 'entity_type_marker' -> input_dim = Word_embedding_size
    B, S = 2, 8            # batch, number of entity-pair spans
    D = 32                 # Word_embedding_size -> relation_input_dim
    H = D // 2             # fc1 hidden
    R = 3                  # number of relations (binary classifiers)

    key = jax.random.PRNGKey(0)
    kx, k1, k2 = jax.random.split(key, 3)

    x = jax.random.normal(kx, (B, S, D), dtype=jnp.float32)

    # Deterministic PyTorch-Linear-style init: U(-1/sqrt(fan_in), 1/sqrt(fan_in))
    w1_stack = jax.random.uniform(
        k1, (R, H, D), dtype=jnp.float32,
        minval=-1.0 / jnp.sqrt(D), maxval=1.0 / jnp.sqrt(D))
    w2_stack = jax.random.uniform(
        k2, (R, 2, H), dtype=jnp.float32,
        minval=-1.0 / jnp.sqrt(H), maxval=1.0 / jnp.sqrt(H))

    # Pack / pre-transpose the relation weights ONCE (outside the jitted forward).
    w1_all, w2_blk = pack_relation_weights(w1_stack, w2_stack)
    w1_all, w2_blk = jax.block_until_ready(w1_all), jax.block_until_ready(w2_blk)

    pred_type, loss_list = relation_classifier_forward(
        x, w1_all, w2_blk, num_relations=R)
    jax.block_until_ready(pred_type)
    jax.block_until_ready(loss_list)

    ref_pred, ref_loss = _reference_forward(x, w1_stack, w2_stack)
    assert pred_type.shape == (B, S)
    assert len(loss_list) == R and loss_list[0].shape == (B, S, 2)
    assert bool(jnp.all(pred_type == ref_pred))
    for r in range(R):
        assert bool(jnp.allclose(loss_list[r], ref_loss[r], atol=2e-3, rtol=2e-3))

    print("KERNEL_OK")
</pallas_src>

<mosaic_0001>
module attributes {stable_mosaic.version = 11 : i64} {
  func.func @fused_relation_kernel(%arg0: i32, %arg1: memref<16x32xf32, #tpu.memory_space<vmem>>, %arg2: memref<32x256xbf16, #tpu.memory_space<vmem>>, %arg3: memref<256x128xbf16, #tpu.memory_space<vmem>>, %arg4: memref<16x128xf32, #tpu.memory_space<vmem>>) attributes {dimension_semantics = [#tpu.dimension_semantics<parallel>], iteration_bounds = array<i64: 1>, scalar_prefetch = 0 : i64, scratch_operands = 0 : i64, tpu.core_type = #tpu.core_type<tc>, window_params = [{transform_indices = @transform_0, window_bounds = array<i64: 16, 32>}, {pipeline_mode = #tpu.pipeline_mode<synchronous>, transform_indices = @transform_1, window_bounds = array<i64: 32, 256>}, {pipeline_mode = #tpu.pipeline_mode<synchronous>, transform_indices = @transform_2, window_bounds = array<i64: 256, 128>}, {transform_indices = @transform_3, window_bounds = array<i64: 16, 128>}]} {
    %c0 = arith.constant 0 : index
    %c0_0 = arith.constant 0 : index
    %0 = vector.load %arg1[%c0, %c0_0] : memref<16x32xf32, #tpu.memory_space<vmem>>, vector<16x32xf32>
    %1 = arith.truncf %0 : vector<16x32xf32> to vector<16x32xbf16>
    %c0_1 = arith.constant 0 : index
    %c0_2 = arith.constant 0 : index
    %2 = vector.load %arg2[%c0_1, %c0_2] : memref<32x256xbf16, #tpu.memory_space<vmem>>, vector<32x256xbf16>
    %cst = arith.constant dense<0.000000e+00> : vector<16x256xf32>
    %3 = tpu.matmul %1, %2, %cst {dimension_numbers = #tpu.dot_dimension_numbers<[1], [0], [0], [1], [0, 0, 1, 1], [], []>} : vector<16x32xbf16>, vector<32x256xbf16>, vector<16x256xf32> -> vector<16x256xf32>
    %cst_3 = arith.constant 0.000000e+00 : f32
    %4 = vector.broadcast %cst_3 : f32 to vector<16x256xf32>
    %5 = arith.maximumf %3, %4 : vector<16x256xf32>
    %6 = arith.truncf %5 : vector<16x256xf32> to vector<16x256xbf16>
    %c0_4 = arith.constant 0 : index
    %c0_5 = arith.constant 0 : index
    %7 = vector.load %arg3[%c0_4, %c0_5] : memref<256x128xbf16, #tpu.memory_space<vmem>>, vector<256x128xbf16>
    %cst_6 = arith.constant dense<0.000000e+00> : vector<16x128xf32>
    %8 = tpu.matmul %6, %7, %cst_6 {dimension_numbers = #tpu.dot_dimension_numbers<[1], [0], [0], [1], [0, 0, 1, 1], [], []>} : vector<16x256xbf16>, vector<256x128xbf16>, vector<16x128xf32> -> vector<16x128xf32>
    %c0_7 = arith.constant 0 : index
    %c0_8 = arith.constant 0 : index
    %9 = vector.load %arg4[%c0_7, %c0_8] : memref<16x128xf32, #tpu.memory_space<vmem>>, vector<16x128xf32>
    tpu.vector_store %arg4[%c0_7, %c0_8], %8 {strides = array<i32>} : memref<16x128xf32, #tpu.memory_space<vmem>>, vector<16x128xf32>,
    return
  }
  func.func @transform_0(%arg0: i32) -> (i32, i32) {
    %c0_i32 = arith.constant 0 : i32
    %c0_i32_0 = arith.constant 0 : i32
    return %arg0, %c0_i32 : i32, i32
  }
  func.func @transform_1(%arg0: i32) -> (i32, i32) {
    %c0_i32 = arith.constant 0 : i32
    %c0_i32_0 = arith.constant 0 : i32
    %c0_i32_1 = arith.constant 0 : i32
    return %c0_i32, %c0_i32_0 : i32, i32
  }
  func.func @transform_2(%arg0: i32) -> (i32, i32) {
    %c0_i32 = arith.constant 0 : i32
    %c0_i32_0 = arith.constant 0 : i32
    %c0_i32_1 = arith.constant 0 : i32
    return %c0_i32, %c0_i32_0 : i32, i32
  }
  func.func @transform_3(%arg0: i32) -> (i32, i32) {
    %c0_i32 = arith.constant 0 : i32
    %c0_i32_0 = arith.constant 0 : i32
    return %arg0, %c0_i32 : i32, i32
  }
}

</mosaic_0001>

<llo_original>
// kernel: relation_classifier_forward.1
$region0: #{relation_classifier_forward.1}
  #allocation0 [shape = 'u32[]', space=smem, size = 0x4, offset = 0x4, fixed_abs, tag = 'smem constant byte address 0x4 - core index']
  #allocation1 [shape = 'u32[144,128]{1,0:T(1,128)}', space=vmem, size = 0x12000, scoped, tag = 'internal scratch']
  %s0 = inlined_call_operand.hbm [shape: f32[16,32], index: 0, kind: input, shape index: {}]
  %s1 = inlined_call_operand.hbm [shape: bf16[32,256], index: 1, kind: input, shape index: {}]
  %s2 = inlined_call_operand.hbm [shape: bf16[256,128], index: 2, kind: input, shape index: {}]
  %s3 = inlined_call_operand.vmem [shape: f32[16,128], index: 3, kind: output, shape index: {}]
  %s4 = sld [smem:[#allocation0]]
  $region34: #{relation_classifier_forward.1} parent=0
    _
  %s6 = ssub.s32 1, %s4
  %s7 = scalar_select 0, %s6, %s4
  $region1: #{relation_classifier_forward.1} parent=0
    #allocation2 [shape = 'u8[8192]{0}', space=vmem, size = 0x2000, scoped, tag = 'input window, operand 0, single buffered']
    #allocation3 [shape = 's32[1]{0}', space=sflag, size = 0x4, scoped, tag = 'scoped memory for relation_classifier_forward.1']
    #allocation4 [shape = 'u8[16384]{0}', space=vmem, size = 0x4000, scoped, tag = 'input window, operand 1, single buffered']
    #allocation5 [shape = 's32[1]{0}', space=sflag, size = 0x4, scoped, tag = 'scoped memory for relation_classifier_forward.1']
    #allocation6 [shape = 'u8[65536]{0}', space=vmem, size = 0x10000, scoped, tag = 'input window, operand 2, single buffered']
    %8 = vsyncpa [#allocation3], 0
    %9 = vsyncpa [#allocation5], 0
    // Predicated region
    $region2: #{relation_classifier_forward.1} parent=1 // pred_check
      _
    $region3: #{relation_classifier_forward.1} parent=1 // pred_check_branch
      %11 = sbr.rel (0) target = $region5
    $region4: #{relation_classifier_forward.1} parent=1 // pred_region
      %s13 = ssub.s32 256, 256
      %14 = vsyncadd [#allocation3], %s13
      %s15 = sshll.u32 [#allocation2], 4
      %s16 = int_to_ptr.vmem [resolvable:$true] %s15
      %21 = dma.hbm_to_vmem [thread:$0]  %s0, 256, %s16, [#allocation3], 128, 128, 8
    $region5: #{relation_classifier_forward.1} parent=1 // pred_fallthru
      _
    // Predicated region
    $region6: #{relation_classifier_forward.1} parent=1 // pred_check
      _
    $region7: #{relation_classifier_forward.1} parent=1 // pred_check_branch
      %23 = sbr.rel (0) target = $region9
    $region8: #{relation_classifier_forward.1} parent=1 // pred_region
      %s25 = ssub.s32 512, 512
      %26 = vsyncadd [#allocation5], %s25
      %s27 = sshll.u32 [#allocation4], 4
      %s28 = int_to_ptr.vmem [resolvable:$true] %s27
      %33 = dma.hbm_to_vmem [thread:$0]  %s1, 512, %s28, [#allocation5], 128, 128, 8
    $region9: #{relation_classifier_forward.1} parent=1 // pred_fallthru
      _
    // Predicated region
    $region10: #{relation_classifier_forward.1} parent=1 // pred_check
      _
    $region11: #{relation_classifier_forward.1} parent=1 // pred_check_branch
      %35 = sbr.rel (0) target = $region13
    $region12: #{relation_classifier_forward.1} parent=1 // pred_region
      %s37 = ssub.s32 2048, 2048
      %38 = vsyncadd [#allocation5], %s37
      %s39 = sshll.u32 [#allocation6], 4
      %s40 = int_to_ptr.vmem [resolvable:$true] %s39
      %45 = dma.hbm_to_vmem [thread:$0]  %s2, 2048, %s40, [#allocation5], 64, 64, 4
    $region13: #{relation_classifier_forward.1} parent=1 // pred_fallthru
      _
    // Predicated region
    $region14: #{relation_classifier_forward.1} parent=1 // pred_check
      _
    $region15: #{relation_classifier_forward.1} parent=1 // pred_check_branch
      %47 = sbr.rel (0) target = $region17
    $region16: #{relation_classifier_forward.1} parent=1 // pred_region
      %48 = dma.done [#allocation3], 256
    $region17: #{relation_classifier_forward.1} parent=1 // pred_fallthru
      _
    // Predicated region
    $region18: #{relation_classifier_forward.1} parent=1 // pred_check
      _
    $region19: #{relation_classifier_forward.1} parent=1 // pred_check_branch
      %50 = sbr.rel (0) target = $region21
    $region20: #{relation_classifier_forward.1} parent=1 // pred_region
      %51 = dma.done [#allocation5], 512
    $region21: #{relation_classifier_forward.1} parent=1 // pred_fallthru
      _
    // Predicated region
    $region22: #{relation_classifier_forward.1} parent=1 // pred_check
      _
    $region23: #{relation_classifier_forward.1} parent=1 // pred_check_branch
      %53 = sbr.rel (0) target = $region25
    $region24: #{relation_classifier_forward.1} parent=1 // pred_region
      %54 = dma.done [#allocation5], 2048
    $region25: #{relation_classifier_forward.1} parent=1 // pred_fallthru
      _
    %v56 = vld [vmem:[#allocation2] sm:$0xff]
    %v57 = vld [vmem:[#allocation2 + $0x8] sm:$0xff]
    %v58 = vpack.c.bf16 %v57, %v56
    %v59 = vld [vmem:[#allocation4] sm:$0xff]
    %v60 = vld [vmem:[#allocation4 + $0x8] sm:$0xff]
    %v61 = vld [vmem:[#allocation4 + $0x10] sm:$0xff]
    %v62 = vld [vmem:[#allocation4 + $0x18] sm:$0xff]
    %v67 = vunpack.c.l.b16 %v59
    %v68 = vunpack.c.h.b16 %v59
    %v69 = vunpack.c.l.b16 %v60
    %v70 = vunpack.c.h.b16 %v60
    %v71 = vunpack.c.l.b16 %v61
    %v72 = vunpack.c.h.b16 %v61
    %v73 = vunpack.c.l.b16 %v62
    %v74 = vunpack.c.h.b16 %v62
    %v75 = vpack.c.b16 %v69, %v67
    %v76 = vpack.c.b16 %v70, %v68
    %v77 = vpack.c.b16 %v73, %v71
    %v78 = vpack.c.b16 %v74, %v72
    %vm83 = vcmask 261120
    %v85 = vsel %vm83, %v58, 0
    %87 = vmatprep.subr.bf16.mxu0 %v76
    %88 = vmatpush1.bf16.msra.mxu0 %v75
    %89 = vmatprep.subr.bf16.mxu0 %v78
    %90 = vmatpush1.bf16.msra.mxu0 %v77
    %91 = vmatprep.subr.bf16.mxu0 0
    %92 = vmatpush1.bf16.msra.mxu0 0
    %93 = vmatprep.subr.bf16.mxu0 0
    %94 = vmatpush1.bf16.msra.mxu0 0
    %95 = vmatprep.subr.bf16.mxu0 0
    %96 = vmatpush1.bf16.msra.mxu0 0
    %97 = vmatprep.subr.bf16.mxu0 0
    %98 = vmatpush1.bf16.msra.mxu0 0
    %99 = vmatprep.subr.bf16.mxu0 0
    %100 = vmatpush1.bf16.msra.mxu0 0
    %101 = vmatprep.subr.bf16.mxu0 0
    %102 = vmatpush1.bf16.msra.mxu0 0
    %103 = vmatprep.subr.bf16.mxu0 0
    %104 = vmatpush1.bf16.msra.mxu0 0
    %105 = vmatprep.subr.bf16.mxu0 0
    %106 = vmatpush1.bf16.msra.mxu0 0
    %107 = vmatprep.subr.bf16.mxu0 0
    %108 = vmatpush1.bf16.msra.mxu0 0
    %109 = vmatprep.subr.bf16.mxu0 0
    %110 = vmatpush1.bf16.msra.mxu0 0
    %111 = vmatprep.subr.bf16.mxu0 0
    %112 = vmatpush1.bf16.msra.mxu0 0
    %113 = vmatprep.subr.bf16.mxu0 0
    %114 = vmatpush1.bf16.msra.mxu0 0
    %115 = vmatprep.subr.bf16.mxu0 0
    %116 = vmatpush1.bf16.msra.mxu0 0
    %117 = vmatprep.subr.bf16.mxu0 0
    %118 = vmatpush1.bf16.msra.mxu0 0
    %119 = vmatprep.mubr.bf16.mxu0 0
    %120 = vmatmul.mubr.bf16.gmra.mrb[0].mxu0 %v85
    %v121 = vpop.f32.mrb[0].mxu0
    %v122 = vadd.f32 0.0, %v121
    %v123 = vpop.f32.mrb[0].mxu0
    %v124 = vadd.f32 0.0, %v123
    %v125 = vpop.f32.mrb[0].mxu0
    %v126 = vadd.f32 0.0, %v125
    %v127 = vpop.f32.mrb[0].mxu0
    %v128 = vadd.f32 0.0, %v127
    %129 = vdwg.mxu0
    %v130 = vmax.f32 %v122, 0.0
    %v131 = vmax.f32 %v124, 0.0
    %v132 = vmax.f32 %v126, 0.0
    %v133 = vmax.f32 %v128, 0.0
    %v134 = vpack.c.bf16 %v132, %v130
    %v135 = vpack.c.bf16 %v133, %v131
    %v136 = vld [vmem:[#allocation6] sm:$0xf]
    %v137 = vld [vmem:[#allocation6 + $0x4] sm:$0xf]
    %v138 = vld [vmem:[#allocation6 + $0x8] sm:$0xf]
    %v139 = vld [vmem:[#allocation6 + $0xc] sm:$0xf]
    %v140 = vld [vmem:[#allocation6 + $0x10] sm:$0xf]
    %v141 = vld [vmem:[#allocation6 + $0x14] sm:$0xf]
    %v142 = vld [vmem:[#allocation6 + $0x18] sm:$0xf]
    %v143 = vld [vmem:[#allocation6 + $0x1c] sm:$0xf]
    %v144 = vld [vmem:[#allocation6 + $0x20] sm:$0xf]
    %v145 = vld [vmem:[#allocation6 + $0x24] sm:$0xf]
    %v146 = vld [vmem:[#allocation6 + $0x28] sm:$0xf]
    %v147 = vld [vmem:[#allocation6 + $0x2c] sm:$0xf]
    %v148 = vld [vmem:[#allocation6 + $0x30] sm:$0xf]
    %v149 = vld [vmem:[#allocation6 + $0x34] sm:$0xf]
    %v150 = vld [vmem:[#allocation6 + $0x38] sm:$0xf]
    %v151 = vld [vmem:[#allocation6 + $0x3c] sm:$0xf]
    %v152 = vld [vmem:[#allocation6 + $0x40] sm:$0xf]
    %v153 = vld [vmem:[#allocation6 + $0x44] sm:$0xf]
    %v154 = vld [vmem:[#allocation6 + $0x48] sm:$0xf]
    %v155 = vld [vmem:[#allocation6 + $0x4c] sm:$0xf]
    %v156 = vld [vmem:[#allocation6 + $0x50] sm:$0xf]
    %v157 = vld [vmem:[#allocation6 + $0x54] sm:$0xf]
    %v158 = vld [vmem:[#allocation6 + $0x58] sm:$0xf]
    %v159 = vld [vmem:[#allocation6 + $0x5c] sm:$0xf]
    %v160 = vld [vmem:[#allocation6 + $0x60] sm:$0xf]
    %v161 = vld [vmem:[#allocation6 + $0x64] sm:$0xf]
    %v162 = vld [vmem:[#allocation6 + $0x68] sm:$0xf]
    %v163 = vld [vmem:[#allocation6 + $0x6c] sm:$0xf]
    %v164 = vld [vmem:[#allocation6 + $0x70] sm:$0xf]
    %v165 = vld [vmem:[#allocation6 + $0x74] sm:$0xf]
    %v166 = vld [vmem:[#allocation6 + $0x78] sm:$0xf]
    %v167 = vld [vmem:[#allocation6 + $0x7c] sm:$0xf]
    %v200 = vunpack.c.l.b16 %v136
    %v201 = vunpack.c.l.b16 %v137
    %v202 = vunpack.c.l.b16 %v138
    %v203 = vunpack.c.l.b16 %v139
    %v204 = vunpack.c.l.b16 %v140
    %v205 = vunpack.c.l.b16 %v141
    %v206 = vunpack.c.l.b16 %v142
    %v207 = vunpack.c.l.b16 %v143
    %v208 = vunpack.c.l.b16 %v144
    %v209 = vunpack.c.l.b16 %v145
    %v210 = vunpack.c.l.b16 %v146
    %v211 = vunpack.c.l.b16 %v147
    %v212 = vunpack.c.l.b16 %v148
    %v213 = vunpack.c.l.b16 %v149
    %v214 = vunpack.c.l.b16 %v150
    %v215 = vunpack.c.l.b16 %v151
    %v216 = vunpack.c.l.b16 %v152
    %v217 = vunpack.c.l.b16 %v153
    %v218 = vunpack.c.l.b16 %v154
    %v219 = vunpack.c.l.b16 %v155
    %v220 = vunpack.c.l.b16 %v156
    %v221 = vunpack.c.l.b16 %v157
    %v222 = vunpack.c.l.b16 %v158
    %v223 = vunpack.c.l.b16 %v159
    %v224 = vunpack.c.l.b16 %v160
    %v225 = vunpack.c.l.b16 %v161
    %v226 = vunpack.c.l.b16 %v162
    %v227 = vunpack.c.l.b16 %v163
    %v228 = vunpack.c.l.b16 %v164
    %v229 = vunpack.c.l.b16 %v165
    %v230 = vunpack.c.l.b16 %v166
    %v231 = vunpack.c.l.b16 %v167
    %v232 = vpack.c.b16 %v201, %v200
    %v233 = vpack.c.b16 %v203, %v202
    %v234 = vpack.c.b16 %v205, %v204
    %v235 = vpack.c.b16 %v207, %v206
    %v236 = vpack.c.b16 %v209, %v208
    %v237 = vpack.c.b16 %v211, %v210
    %v238 = vpack.c.b16 %v213, %v212
    %v239 = vpack.c.b16 %v215, %v214
    %v240 = vpack.c.b16 %v217, %v216
    %v241 = vpack.c.b16 %v219, %v218
    %v242 = vpack.c.b16 %v221, %v220
    %v243 = vpack.c.b16 %v223, %v222
    %v244 = vpack.c.b16 %v225, %v224
    %v245 = vpack.c.b16 %v227, %v226
    %v246 = vpack.c.b16 %v229, %v228
    %v247 = vpack.c.b16 %v231, %v230
    %264 = vmatprep.subr.bf16.mxu0 0
    %265 = vmatpush1.bf16.msra.mxu0 %v232
    %266 = vmatprep.subr.bf16.mxu0 0
    %267 = vmatpush1.bf16.msra.mxu0 %v233
    %268 = vmatprep.subr.bf16.mxu0 0
    %269 = vmatpush1.bf16.msra.mxu0 %v234
    %270 = vmatprep.subr.bf16.mxu0 0
    %271 = vmatpush1.bf16.msra.mxu0 %v235
    %272 = vmatprep.subr.bf16.mxu0 0
    %273 = vmatpush1.bf16.msra.mxu0 %v236
    %274 = vmatprep.subr.bf16.mxu0 0
    %275 = vmatpush1.bf16.msra.mxu0 %v237
    %276 = vmatprep.subr.bf16.mxu0 0
    %277 = vmatpush1.bf16.msra.mxu0 %v238
    %278 = vmatprep.subr.bf16.mxu0 0
    %279 = vmatpush1.bf16.msra.mxu0 %v239
    %280 = vmatprep.subr.bf16.mxu0 0
    %281 = vmatpush1.bf16.msra.mxu0 %v240
    %282 = vmatprep.subr.bf16.mxu0 0
    %283 = vmatpush1.bf16.msra.mxu0 %v241
    %284 = vmatprep.subr.bf16.mxu0 0
    %285 = vmatpush1.bf16.msra.mxu0 %v242
    %286 = vmatprep.subr.bf16.mxu0 0
    %287 = vmatpush1.bf16.msra.mxu0 %v243
    %288 = vmatprep.subr.bf16.mxu0 0
    %289 = vmatpush1.bf16.msra.mxu0 %v244
    %290 = vmatprep.subr.bf16.mxu0 0
    %291 = vmatpush1.bf16.msra.mxu0 %v245
    %292 = vmatprep.subr.bf16.mxu0 0
    %293 = vmatpush1.bf16.msra.mxu0 %v246
    %294 = vmatprep.subr.bf16.mxu0 0
    %295 = vmatpush1.bf16.msra.mxu0 %v247
    %296 = vmatprep.mubr.bf16.mxu0 %v135
    %297 = vmatmul.mubr.bf16.gmra.mrb[0].mxu0 %v134
    %v298 = vpop.f32.mrb[0].mxu0
    %v299 = vadd.f32 0.0, %v298
    %v300 = vpop.f32.mrb[0].mxu0
    %v301 = vpop.f32.mrb[0].mxu0
    %v302 = vadd.f32 0.0, %v301
    %v303 = vpop.f32.mrb[0].mxu0
    %304 = vdwg.mxu0
    %305 = vst [vmem:[%s3] sm:$0xff] %v299
    %306 = vst [vmem:[%s3 + $0x8] sm:$0xff] %v302
    // Predicated region
    $region26: #{relation_classifier_forward.1} parent=1 // pred_check
      _
    $region27: #{relation_classifier_forward.1} parent=1 // pred_check_branch
      %308 = sbr.rel (0) target = $region29
    $region28: #{relation_classifier_forward.1} parent=1 // pred_region
      _
    $region29: #{relation_classifier_forward.1} parent=1 // pred_fallthru
      _
    // Predicated region
    $region30: #{relation_classifier_forward.1} parent=1 // pred_check
      _
    $region31: #{relation_classifier_forward.1} parent=1 // pred_check_branch
      %310 = sbr.rel (0) target = $region33
    $region32: #{relation_classifier_forward.1} parent=1 // pred_region
      _
    $region33: #{relation_classifier_forward.1} parent=1 // pred_fallthru
      _
    %311 = vsyncpa [#allocation3], 1
    %312 = vsyncpa [#allocation5], 1

</llo_original>
